<compile_context>
chip_gen: v5e
topology: v5e:2x2
jax: 0.10.0
libtpu: 0.0.40
codegen_flags: <defaults>
</compile_context>

<pallas_src>
import math

import jax
import jax.numpy as jnp
from jax.experimental import pallas as pl
from jax.experimental.pallas import tpu as pltpu

LANE = 128
SUBLANE = 8


def _round_up(v, m):
    return ((v + m - 1) // m) * m


def dqn_kernel(x_ref, w1_ref, b1_ref, w2_ref, b2_ref, w3_ref, b3_ref, out_ref):
    n_obs = w1_ref.shape[0]

    # ---- layer 1: f32 on the VPU (contraction dim is tiny, e.g. 4) ----------
    x = x_ref[...]                                   # (tb, n_obs) f32
    h1 = b1_ref[...]                                 # (1, h_pad) f32
    for k in range(n_obs):                           # static unroll over features
        h1 = h1 + x[:, k:k + 1] * w1_ref[k:k + 1, :]
    h1 = jnp.maximum(h1, 0.0)                        # (tb, h_pad) f32

    # ---- layers 2/3: bf16 MXU inputs, f32 accumulation + f32 epilogue -------
    h2 = jnp.dot(h1.astype(w2_ref.dtype), w2_ref[...],
                 preferred_element_type=jnp.float32) + b2_ref[...]
    h2 = jnp.maximum(h2, 0.0)

    q = jnp.dot(h2.astype(w3_ref.dtype), w3_ref[...],
                preferred_element_type=jnp.float32)  # (tb, 128), full MXU width

    n_act = out_ref.shape[1]
    out_ref[...] = q[:, :n_act] + b3_ref[...]        # narrow store (tiny bytes)


def dqn_forward(x, params):
    """x: (B, n_observations) f32 (unpadded). params: tensors from init_params."""
    w1, b1, w2, b2, w3, b3 = params
    B, n_obs = x.shape
    h_pad = w1.shape[1]
    a_mxu = w3.shape[1]
    n_actions = b3.shape[1]

    # Batch tiling: one tile for small batches; otherwise <=512-row tiles with
    # at least 2 tiles so v7x's two TensorCores both get a share.
    if B <= 256:
        tb = _round_up(max(B, 1), SUBLANE)
    else:
        tb = min(512, _round_up(pl.cdiv(B, 2), SUBLANE))
    grid = (pl.cdiv(B, tb),)

    const = lambda i: (0, 0)  # weights/biases: same block every step -> VMEM-resident
    return pl.pallas_call(
        dqn_kernel,
        out_shape=jax.ShapeDtypeStruct((B, n_actions), jnp.float32),
        grid=grid,
        in_specs=[
            pl.BlockSpec((tb, n_obs), lambda i: (i, 0)),   # x, unpadded features
            pl.BlockSpec((n_obs, h_pad), const),           # w1 (f32)
            pl.BlockSpec((1, h_pad), const),               # b1 (f32)
            pl.BlockSpec((h_pad, h_pad), const),           # w2 (bf16)
            pl.BlockSpec((1, h_pad), const),               # b2 (f32)
            pl.BlockSpec((h_pad, a_mxu), const),           # w3 (bf16, 128 cols)
            pl.BlockSpec((1, n_actions), const),           # b3 (f32, unpadded)
        ],
        out_specs=pl.BlockSpec((tb, n_actions), lambda i: (i, 0)),
        compiler_params=pltpu.CompilerParams(
            dimension_semantics=("parallel",)),            # shard batch tiles over TCs
    )(x, w1, b1, w2, b2, w3, b3)


def init_params(key, n_observations, n_actions, hidden=48, mxu_dtype=jnp.bfloat16):
    """torch.nn.Linear-style U(-1/sqrt(fan_in), 1/sqrt(fan_in)) init.

    Weights are stored as (in, out) so the kernel computes x @ W + b
    (== PyTorch x @ W.T + b). Hidden dims are zero-padded to 128 once here;
    w2/w3 are stored in bf16 (MXU input dtype) so the forward pass never casts."""
    ks = jax.random.split(key, 6)
    h_pad = _round_up(hidden, LANE)
    a_mxu = _round_up(max(n_actions, 1), LANE)

    def lin(kw, kb, fan_in, fan_out):
        bound = 1.0 / math.sqrt(fan_in)
        w = jax.random.uniform(kw, (fan_in, fan_out), jnp.float32, -bound, bound)
        b = jax.random.uniform(kb, (1, fan_out), jnp.float32, -bound, bound)
        return w, b

    w1, b1 = lin(ks[0], ks[1], n_observations, hidden)
    w2, b2 = lin(ks[2], ks[3], hidden, hidden)
    w3, b3 = lin(ks[4], ks[5], hidden, n_actions)

    w1p = jnp.zeros((n_observations, h_pad), jnp.float32).at[:, :hidden].set(w1)
    b1p = jnp.zeros((1, h_pad), jnp.float32).at[:, :hidden].set(b1)
    w2p = (jnp.zeros((h_pad, h_pad), jnp.float32)
           .at[:hidden, :hidden].set(w2).astype(mxu_dtype))
    b2p = jnp.zeros((1, h_pad), jnp.float32).at[:, :hidden].set(b2)
    w3p = (jnp.zeros((h_pad, a_mxu), jnp.float32)
           .at[:hidden, :n_actions].set(w3).astype(mxu_dtype))
    b3p = b3  # (1, n_actions) f32, unpadded (added after the in-kernel slice)
    return (w1p, b1p, w2p, b2p, w3p, b3p)


if __name__ == "__main__":
    key = jax.random.PRNGKey(0)
    k_x, k_p = jax.random.split(key)

    batch = 8
    n_observations = 4   # e.g. CartPole observation size
    n_actions = 2
    hidden = 48

    x = jax.random.normal(k_x, (batch, n_observations), dtype=jnp.float32)
    params = init_params(k_p, n_observations, n_actions, hidden=hidden)

    out = jax.block_until_ready(dqn_forward(x, params))

    # Pure-JAX reference mirroring the kernel numerics exactly:
    # layer 1 in f32 with the same summation order, layers 2/3 as bf16 MXU
    # matmuls with f32 accumulation + f32 bias/ReLU.
    w1, b1, w2, b2, w3, b3 = params
    h1 = b1
    for k in range(n_observations):
        h1 = h1 + x[:, k:k + 1] * w1[k:k + 1, :]
    h1 = jnp.maximum(h1, 0.0)
    h2 = jnp.maximum(
        jnp.dot(h1.astype(w2.dtype), w2, preferred_element_type=jnp.float32) + b2, 0.0)
    q = jnp.dot(h2.astype(w3.dtype), w3, preferred_element_type=jnp.float32)
    ref = q[:, :n_actions] + b3

    assert out.shape == (batch, n_actions)
    assert jnp.allclose(out, ref, atol=2e-3, rtol=2e-3)

    print("KERNEL_OK")
</pallas_src>

<mosaic_0001>
module attributes {stable_mosaic.version = 11 : i64} {
  func.func @dqn_kernel(%arg0: i32, %arg1: memref<8x4xf32, #tpu.memory_space<vmem>>, %arg2: memref<4x128xf32, #tpu.memory_space<vmem>>, %arg3: memref<1x128xf32, #tpu.memory_space<vmem>>, %arg4: memref<128x128xbf16, #tpu.memory_space<vmem>>, %arg5: memref<1x128xf32, #tpu.memory_space<vmem>>, %arg6: memref<128x128xbf16, #tpu.memory_space<vmem>>, %arg7: memref<1x2xf32, #tpu.memory_space<vmem>>, %arg8: memref<8x2xf32, #tpu.memory_space<vmem>>) attributes {dimension_semantics = [#tpu.dimension_semantics<parallel>], iteration_bounds = array<i64: 1>, scalar_prefetch = 0 : i64, scratch_operands = 0 : i64, tpu.core_type = #tpu.core_type<tc>, window_params = [{transform_indices = @transform_0, window_bounds = array<i64: 8, 4>}, {pipeline_mode = #tpu.pipeline_mode<synchronous>, transform_indices = @transform_1, window_bounds = array<i64: 4, 128>}, {pipeline_mode = #tpu.pipeline_mode<synchronous>, transform_indices = @transform_2, window_bounds = array<i64: 1, 128>}, {pipeline_mode = #tpu.pipeline_mode<synchronous>, transform_indices = @transform_3, window_bounds = array<i64: 128, 128>}, {pipeline_mode = #tpu.pipeline_mode<synchronous>, transform_indices = @transform_4, window_bounds = array<i64: 1, 128>}, {pipeline_mode = #tpu.pipeline_mode<synchronous>, transform_indices = @transform_5, window_bounds = array<i64: 128, 128>}, {pipeline_mode = #tpu.pipeline_mode<synchronous>, transform_indices = @transform_6, window_bounds = array<i64: 1, 2>}, {transform_indices = @transform_7, window_bounds = array<i64: 8, 2>}]} {
    %c0 = arith.constant 0 : index
    %c0_0 = arith.constant 0 : index
    %0 = vector.load %arg1[%c0, %c0_0] : memref<8x4xf32, #tpu.memory_space<vmem>>, vector<8x4xf32>
    %c0_1 = arith.constant 0 : index
    %c0_2 = arith.constant 0 : index
    %1 = vector.load %arg3[%c0_1, %c0_2] : memref<1x128xf32, #tpu.memory_space<vmem>>, vector<1x128xf32>
    %2 = vector.extract_strided_slice %0 {offsets = [0, 0], sizes = [8, 1], strides = [1, 1]} : vector<8x4xf32> to vector<8x1xf32>
    %c0_3 = arith.constant 0 : index
    %c0_4 = arith.constant 0 : index
    %3 = vector.load %arg2[%c0_3, %c0_4] : memref<4x128xf32, #tpu.memory_space<vmem>>, vector<1x128xf32>
    %4 = vector.broadcast %2 : vector<8x1xf32> to vector<8x128xf32>
    %5 = vector.broadcast %3 : vector<1x128xf32> to vector<8x128xf32>
    %6 = arith.mulf %4, %5 : vector<8x128xf32>
    %7 = vector.broadcast %1 : vector<1x128xf32> to vector<8x128xf32>
    %8 = arith.addf %7, %6 : vector<8x128xf32>
    %9 = vector.extract_strided_slice %0 {offsets = [0, 1], sizes = [8, 1], strides = [1, 1]} : vector<8x4xf32> to vector<8x1xf32>
    %c1 = arith.constant 1 : index
    %c0_5 = arith.constant 0 : index
    %10 = vector.load %arg2[%c1, %c0_5] : memref<4x128xf32, #tpu.memory_space<vmem>>, vector<1x128xf32>
    %11 = vector.broadcast %9 : vector<8x1xf32> to vector<8x128xf32>
    %12 = vector.broadcast %10 : vector<1x128xf32> to vector<8x128xf32>
    %13 = arith.mulf %11, %12 : vector<8x128xf32>
    %14 = arith.addf %8, %13 : vector<8x128xf32>
    %15 = vector.extract_strided_slice %0 {offsets = [0, 2], sizes = [8, 1], strides = [1, 1]} : vector<8x4xf32> to vector<8x1xf32>
    %c2 = arith.constant 2 : index
    %c0_6 = arith.constant 0 : index
    %16 = vector.load %arg2[%c2, %c0_6] : memref<4x128xf32, #tpu.memory_space<vmem>>, vector<1x128xf32>
    %17 = vector.broadcast %15 : vector<8x1xf32> to vector<8x128xf32>
    %18 = vector.broadcast %16 : vector<1x128xf32> to vector<8x128xf32>
    %19 = arith.mulf %17, %18 : vector<8x128xf32>
    %20 = arith.addf %14, %19 : vector<8x128xf32>
    %21 = vector.extract_strided_slice %0 {offsets = [0, 3], sizes = [8, 1], strides = [1, 1]} : vector<8x4xf32> to vector<8x1xf32>
    %c3 = arith.constant 3 : index
    %c0_7 = arith.constant 0 : index
    %22 = vector.load %arg2[%c3, %c0_7] : memref<4x128xf32, #tpu.memory_space<vmem>>, vector<1x128xf32>
    %23 = vector.broadcast %21 : vector<8x1xf32> to vector<8x128xf32>
    %24 = vector.broadcast %22 : vector<1x128xf32> to vector<8x128xf32>
    %25 = arith.mulf %23, %24 : vector<8x128xf32>
    %26 = arith.addf %20, %25 : vector<8x128xf32>
    %cst = arith.constant 0.000000e+00 : f32
    %27 = vector.broadcast %cst : f32 to vector<8x128xf32>
    %28 = arith.maximumf %26, %27 : vector<8x128xf32>
    %29 = arith.truncf %28 : vector<8x128xf32> to vector<8x128xbf16>
    %c0_8 = arith.constant 0 : index
    %c0_9 = arith.constant 0 : index
    %30 = vector.load %arg4[%c0_8, %c0_9] : memref<128x128xbf16, #tpu.memory_space<vmem>>, vector<128x128xbf16>
    %cst_10 = arith.constant dense<0.000000e+00> : vector<8x128xf32>
    %31 = tpu.matmul %29, %30, %cst_10 {dimension_numbers = #tpu.dot_dimension_numbers<[1], [0], [0], [1], [0, 0, 1, 1], [], []>} : vector<8x128xbf16>, vector<128x128xbf16>, vector<8x128xf32> -> vector<8x128xf32>
    %c0_11 = arith.constant 0 : index
    %c0_12 = arith.constant 0 : index
    %32 = vector.load %arg5[%c0_11, %c0_12] : memref<1x128xf32, #tpu.memory_space<vmem>>, vector<1x128xf32>
    %33 = vector.broadcast %32 : vector<1x128xf32> to vector<8x128xf32>
    %34 = arith.addf %31, %33 : vector<8x128xf32>
    %cst_13 = arith.constant 0.000000e+00 : f32
    %35 = vector.broadcast %cst_13 : f32 to vector<8x128xf32>
    %36 = arith.maximumf %34, %35 : vector<8x128xf32>
    %37 = arith.truncf %36 : vector<8x128xf32> to vector<8x128xbf16>
    %c0_14 = arith.constant 0 : index
    %c0_15 = arith.constant 0 : index
    %38 = vector.load %arg6[%c0_14, %c0_15] : memref<128x128xbf16, #tpu.memory_space<vmem>>, vector<128x128xbf16>
    %cst_16 = arith.constant dense<0.000000e+00> : vector<8x128xf32>
    %39 = tpu.matmul %37, %38, %cst_16 {dimension_numbers = #tpu.dot_dimension_numbers<[1], [0], [0], [1], [0, 0, 1, 1], [], []>} : vector<8x128xbf16>, vector<128x128xbf16>, vector<8x128xf32> -> vector<8x128xf32>
    %40 = vector.extract_strided_slice %39 {offsets = [0, 0], sizes = [8, 2], strides = [1, 1]} : vector<8x128xf32> to vector<8x2xf32>
    %c0_17 = arith.constant 0 : index
    %c0_18 = arith.constant 0 : index
    %41 = vector.load %arg7[%c0_17, %c0_18] : memref<1x2xf32, #tpu.memory_space<vmem>>, vector<1x2xf32>
    %42 = vector.broadcast %41 : vector<1x2xf32> to vector<8x2xf32>
    %43 = arith.addf %40, %42 : vector<8x2xf32>
    %c0_19 = arith.constant 0 : index
    %c0_20 = arith.constant 0 : index
    %44 = vector.load %arg8[%c0_19, %c0_20] : memref<8x2xf32, #tpu.memory_space<vmem>>, vector<8x2xf32>
    tpu.vector_store %arg8[%c0_19, %c0_20], %43 {strides = array<i32>} : memref<8x2xf32, #tpu.memory_space<vmem>>, vector<8x2xf32>,
    return
  }
  func.func @transform_0(%arg0: i32) -> (i32, i32) {
    %c0_i32 = arith.constant 0 : i32
    %c0_i32_0 = arith.constant 0 : i32
    return %arg0, %c0_i32 : i32, i32
  }
  func.func @transform_1(%arg0: i32) -> (i32, i32) {
    %c0_i32 = arith.constant 0 : i32
    %c0_i32_0 = arith.constant 0 : i32
    %c0_i32_1 = arith.constant 0 : i32
    return %c0_i32, %c0_i32_0 : i32, i32
  }
  func.func @transform_2(%arg0: i32) -> (i32, i32) {
    %c0_i32 = arith.constant 0 : i32
    %c0_i32_0 = arith.constant 0 : i32
    %c0_i32_1 = arith.constant 0 : i32
    return %c0_i32, %c0_i32_0 : i32, i32
  }
  func.func @transform_3(%arg0: i32) -> (i32, i32) {
    %c0_i32 = arith.constant 0 : i32
    %c0_i32_0 = arith.constant 0 : i32
    %c0_i32_1 = arith.constant 0 : i32
    return %c0_i32, %c0_i32_0 : i32, i32
  }
  func.func @transform_4(%arg0: i32) -> (i32, i32) {
    %c0_i32 = arith.constant 0 : i32
    %c0_i32_0 = arith.constant 0 : i32
    %c0_i32_1 = arith.constant 0 : i32
    return %c0_i32, %c0_i32_0 : i32, i32
  }
  func.func @transform_5(%arg0: i32) -> (i32, i32) {
    %c0_i32 = arith.constant 0 : i32
    %c0_i32_0 = arith.constant 0 : i32
    %c0_i32_1 = arith.constant 0 : i32
    return %c0_i32, %c0_i32_0 : i32, i32
  }
  func.func @transform_6(%arg0: i32) -> (i32, i32) {
    %c0_i32 = arith.constant 0 : i32
    %c0_i32_0 = arith.constant 0 : i32
    %c0_i32_1 = arith.constant 0 : i32
    return %c0_i32, %c0_i32_0 : i32, i32
  }
  func.func @transform_7(%arg0: i32) -> (i32, i32) {
    %c0_i32 = arith.constant 0 : i32
    %c0_i32_0 = arith.constant 0 : i32
    return %arg0, %c0_i32 : i32, i32
  }
}

</mosaic_0001>

<llo_original>
// kernel: tpu_custom_call.1
$region0: #{tpu_custom_call.1}
  #allocation0 [shape = 'u32[]', space=smem, size = 0x4, offset = 0x4, fixed_abs, tag = 'smem constant byte address 0x4 - core index']
  #allocation1 [shape = 'u32[72,128]{1,0:T(1,128)}', space=vmem, size = 0x9000, scoped, tag = 'internal scratch']
  %s0 = inlined_call_operand.vmem [shape: f32[8,4], index: 0, kind: input, shape index: {}]
  %s1 = inlined_call_operand.vmem [shape: f32[4,128], index: 1, kind: input, shape index: {}]
  %s2 = inlined_call_operand.vmem [shape: f32[1,128], index: 2, kind: input, shape index: {}]
  %s3 = inlined_call_operand.hbm [shape: bf16[128,128], index: 3, kind: input, shape index: {}]
  %s4 = inlined_call_operand.vmem [shape: f32[1,128], index: 4, kind: input, shape index: {}]
  %s5 = inlined_call_operand.hbm [shape: bf16[128,128], index: 5, kind: input, shape index: {}]
  %s6 = inlined_call_operand.vmem [shape: f32[1,2], index: 6, kind: input, shape index: {}]
  %s7 = inlined_call_operand.vmem [shape: f32[8,2], index: 7, kind: output, shape index: {}]
  %s8 = sld [smem:[#allocation0]]
  $region46: #{tpu_custom_call.1} parent=0
    _
  %s10 = ssub.s32 1, %s8
  %s11 = scalar_select 0, %s10, %s8
  $region1: #{tpu_custom_call.1} parent=0
    #allocation2 [shape = 'u8[32768]{0}', space=vmem, size = 0x8000, scoped, tag = 'input window, operand 3, single buffered']
    #allocation3 [shape = 's32[1]{0}', space=sflag, size = 0x4, scoped, tag = 'scoped memory for tpu_custom_call.1']
    #allocation4 [shape = 'u8[32768]{0}', space=vmem, size = 0x8000, scoped, tag = 'input window, operand 5, single buffered']
    #allocation5 [shape = 's32[1]{0}', space=sflag, size = 0x4, scoped, tag = 'scoped memory for tpu_custom_call.1']
    %12 = vsyncpa [#allocation3], 0
    %13 = vsyncpa [#allocation5], 0
    // Predicated region
    $region2: #{tpu_custom_call.1} parent=1 // pred_check
      _
    $region3: #{tpu_custom_call.1} parent=1 // pred_check_branch
      %15 = sbr.rel (0) target = $region5
    $region4: #{tpu_custom_call.1} parent=1 // pred_region
      _
    $region5: #{tpu_custom_call.1} parent=1 // pred_fallthru
      _
    // Predicated region
    $region6: #{tpu_custom_call.1} parent=1 // pred_check
      _
    $region7: #{tpu_custom_call.1} parent=1 // pred_check_branch
      %17 = sbr.rel (0) target = $region9
    $region8: #{tpu_custom_call.1} parent=1 // pred_region
      _
    $region9: #{tpu_custom_call.1} parent=1 // pred_fallthru
      _
    // Predicated region
    $region10: #{tpu_custom_call.1} parent=1 // pred_check
      _
    $region11: #{tpu_custom_call.1} parent=1 // pred_check_branch
      %19 = sbr.rel (0) target = $region13
    $region12: #{tpu_custom_call.1} parent=1 // pred_region
      _
    $region13: #{tpu_custom_call.1} parent=1 // pred_fallthru
      _
    // Predicated region
    $region14: #{tpu_custom_call.1} parent=1 // pred_check
      _
    $region15: #{tpu_custom_call.1} parent=1 // pred_check_branch
      %21 = sbr.rel (0) target = $region17
    $region16: #{tpu_custom_call.1} parent=1 // pred_region
      %23 = vsyncadd [#allocation3], 0
      %s24 = sshll.u32 %s3, 4
      %s25 = int_to_ptr.hbm [resolvable:$true] %s24
      %s26 = sshll.u32 [#allocation2], 4
      %s27 = int_to_ptr.vmem [resolvable:$true] %s26
      %32 = dma.hbm_to_vmem [thread:$0]  %s25, 1024, %s27, [#allocation3], 64, 64, 4
    $region17: #{tpu_custom_call.1} parent=1 // pred_fallthru
      _
    // Predicated region
    $region18: #{tpu_custom_call.1} parent=1 // pred_check
      _
    $region19: #{tpu_custom_call.1} parent=1 // pred_check_branch
      %34 = sbr.rel (0) target = $region21
    $region20: #{tpu_custom_call.1} parent=1 // pred_region
      _
    $region21: #{tpu_custom_call.1} parent=1 // pred_fallthru
      _
    // Predicated region
    $region22: #{tpu_custom_call.1} parent=1 // pred_check
      _
    $region23: #{tpu_custom_call.1} parent=1 // pred_check_branch
      %36 = sbr.rel (0) target = $region25
    $region24: #{tpu_custom_call.1} parent=1 // pred_region
      %38 = vsyncadd [#allocation5], 0
      %s39 = sshll.u32 %s5, 4
      %s40 = int_to_ptr.hbm [resolvable:$true] %s39
      %s41 = sshll.u32 [#allocation4], 4
      %s42 = int_to_ptr.vmem [resolvable:$true] %s41
      %47 = dma.hbm_to_vmem [thread:$0]  %s40, 1024, %s42, [#allocation5], 64, 64, 4
    $region25: #{tpu_custom_call.1} parent=1 // pred_fallthru
      _
    // Predicated region
    $region26: #{tpu_custom_call.1} parent=1 // pred_check
      _
    $region27: #{tpu_custom_call.1} parent=1 // pred_check_branch
      %49 = sbr.rel (0) target = $region29
    $region28: #{tpu_custom_call.1} parent=1 // pred_region
      _
    $region29: #{tpu_custom_call.1} parent=1 // pred_fallthru
      _
    // Predicated region
    $region30: #{tpu_custom_call.1} parent=1 // pred_check
      _
    $region31: #{tpu_custom_call.1} parent=1 // pred_check_branch
      %51 = sbr.rel (0) target = $region33
    $region32: #{tpu_custom_call.1} parent=1 // pred_region
      %53 = dma.done [#allocation3], 1024
    $region33: #{tpu_custom_call.1} parent=1 // pred_fallthru
      _
    // Predicated region
    $region34: #{tpu_custom_call.1} parent=1 // pred_check
      _
    $region35: #{tpu_custom_call.1} parent=1 // pred_check_branch
      %55 = sbr.rel (0) target = $region37
    $region36: #{tpu_custom_call.1} parent=1 // pred_region
      %57 = dma.done [#allocation5], 1024
    $region37: #{tpu_custom_call.1} parent=1 // pred_fallthru
      _
    %v58 = vld [vmem:[%s0] sm:$0xff]
    %v59 = vld [vmem:[%s2] sm:$0x1]
    %v60 = vld [vmem:[%s1] sm:$0x1]
    %62 = vset.pattern.permute.xlu0 0
    %63 = vperm.xlu0 %62, %v58
    %v64 = vpop.permute.xlu0 %63
    %v66 = vperm.slane %v60, 0
    %v67 = vmul.f32 %v64, %v66
    %v69 = vperm.slane %v59, 0
    %v71 = vadd.f32 %v69, %v67
    %v72 = vld [vmem:[%s1 + $0x1] sm:$0x1]
    %73 = vset.pattern.permute.xlu0 1
    %74 = vperm.xlu0 %73, %v58
    %v75 = vpop.permute.xlu0 %74
    %v77 = vperm.slane %v72, 0
    %v78 = vmul.f32 %v75, %v77
    %v79 = vadd.f32 %v71, %v78
    %v80 = vld [vmem:[%s1 + $0x2] sm:$0x1]
    %81 = vset.pattern.permute.xlu0 2
    %82 = vperm.xlu0 %81, %v58
    %v83 = vpop.permute.xlu0 %82
    %v85 = vperm.slane %v80, 0
    %v86 = vmul.f32 %v83, %v85
    %v87 = vadd.f32 %v79, %v86
    %v88 = vld [vmem:[%s1 + $0x3] sm:$0x1]
    %89 = vset.pattern.permute.xlu0 3
    %90 = vperm.xlu0 %89, %v58
    %v91 = vpop.permute.xlu0 %90
    %v93 = vperm.slane %v88, 0
    %v94 = vmul.f32 %v91, %v93
    %v95 = vadd.f32 %v87, %v94
    %v96 = vmax.f32 %v95, 0.0
    %v97 = vpack.c.bf16 %v96, %v96
    %v98 = vld [vmem:[#allocation2] sm:$0xf]
    %v99 = vld [vmem:[#allocation2 + $0x4] sm:$0xf]
    %v100 = vld [vmem:[#allocation2 + $0x8] sm:$0xf]
    %v101 = vld [vmem:[#allocation2 + $0xc] sm:$0xf]
    %v102 = vld [vmem:[#allocation2 + $0x10] sm:$0xf]
    %v103 = vld [vmem:[#allocation2 + $0x14] sm:$0xf]
    %v104 = vld [vmem:[#allocation2 + $0x18] sm:$0xf]
    %v105 = vld [vmem:[#allocation2 + $0x1c] sm:$0xf]
    %v106 = vld [vmem:[#allocation2 + $0x20] sm:$0xf]
    %v107 = vld [vmem:[#allocation2 + $0x24] sm:$0xf]
    %v108 = vld [vmem:[#allocation2 + $0x28] sm:$0xf]
    %v109 = vld [vmem:[#allocation2 + $0x2c] sm:$0xf]
    %v110 = vld [vmem:[#allocation2 + $0x30] sm:$0xf]
    %v111 = vld [vmem:[#allocation2 + $0x34] sm:$0xf]
    %v112 = vld [vmem:[#allocation2 + $0x38] sm:$0xf]
    %v113 = vld [vmem:[#allocation2 + $0x3c] sm:$0xf]
    %v114 = vld [vmem:[%s4] sm:$0x1]
    %v116 = vperm.slane %v114, 0
    %v134 = vunpack.c.l.b16 %v98
    %v135 = vunpack.c.l.b16 %v99
    %v136 = vunpack.c.l.b16 %v100
    %v137 = vunpack.c.l.b16 %v101
    %v138 = vunpack.c.l.b16 %v102
    %v139 = vunpack.c.l.b16 %v103
    %v140 = vunpack.c.l.b16 %v104
    %v141 = vunpack.c.l.b16 %v105
    %v142 = vunpack.c.l.b16 %v106
    %v143 = vunpack.c.l.b16 %v107
    %v144 = vunpack.c.l.b16 %v108
    %v145 = vunpack.c.l.b16 %v109
    %v146 = vunpack.c.l.b16 %v110
    %v147 = vunpack.c.l.b16 %v111
    %v148 = vunpack.c.l.b16 %v112
    %v149 = vunpack.c.l.b16 %v113
    %v150 = vpack.c.b16 %v135, %v134
    %v151 = vpack.c.b16 %v137, %v136
    %v152 = vpack.c.b16 %v139, %v138
    %v153 = vpack.c.b16 %v141, %v140
    %v154 = vpack.c.b16 %v143, %v142
    %v155 = vpack.c.b16 %v145, %v144
    %v156 = vpack.c.b16 %v147, %v146
    %v157 = vpack.c.b16 %v149, %v148
    %166 = vmatpush.bf16.msra.mxu0 %v157
    %167 = vmatpush.bf16.msra.mxu0 %v156
    %168 = vmatpush.bf16.msra.mxu0 %v155
    %169 = vmatpush.bf16.msra.mxu0 %v154
    %170 = vmatpush.bf16.msra.mxu0 %v153
    %171 = vmatpush.bf16.msra.mxu0 %v152
    %172 = vmatpush.bf16.msra.mxu0 %v151
    %173 = vmatpush.bf16.msra.mxu0 %v150
    %174 = vmatmul.bf16.gmra.mxu0 %v97
    %v175 = vpop.f32.mrf.mxu0
    %v176 = vadd.f32 %v116, %v175
    %v177 = vpop.f32.mrf.mxu0
    %178 = vdwg.mxu0
    %v179 = vmax.f32 %v176, 0.0
    %v180 = vpack.c.bf16 %v179, %v179
    %v181 = vld [vmem:[#allocation4] sm:$0xf]
    %v182 = vld [vmem:[#allocation4 + $0x4] sm:$0xf]
    %v183 = vld [vmem:[#allocation4 + $0x8] sm:$0xf]
    %v184 = vld [vmem:[#allocation4 + $0xc] sm:$0xf]
    %v185 = vld [vmem:[#allocation4 + $0x10] sm:$0xf]
    %v186 = vld [vmem:[#allocation4 + $0x14] sm:$0xf]
    %v187 = vld [vmem:[#allocation4 + $0x18] sm:$0xf]
    %v188 = vld [vmem:[#allocation4 + $0x1c] sm:$0xf]
    %v189 = vld [vmem:[#allocation4 + $0x20] sm:$0xf]
    %v190 = vld [vmem:[#allocation4 + $0x24] sm:$0xf]
    %v191 = vld [vmem:[#allocation4 + $0x28] sm:$0xf]
    %v192 = vld [vmem:[#allocation4 + $0x2c] sm:$0xf]
    %v193 = vld [vmem:[#allocation4 + $0x30] sm:$0xf]
    %v194 = vld [vmem:[#allocation4 + $0x34] sm:$0xf]
    %v195 = vld [vmem:[#allocation4 + $0x38] sm:$0xf]
    %v196 = vld [vmem:[#allocation4 + $0x3c] sm:$0xf]
    %v213 = vunpack.c.l.b16 %v181
    %v214 = vunpack.c.l.b16 %v182
    %v215 = vunpack.c.l.b16 %v183
    %v216 = vunpack.c.l.b16 %v184
    %v217 = vunpack.c.l.b16 %v185
    %v218 = vunpack.c.l.b16 %v186
    %v219 = vunpack.c.l.b16 %v187
    %v220 = vunpack.c.l.b16 %v188
    %v221 = vunpack.c.l.b16 %v189
    %v222 = vunpack.c.l.b16 %v190
    %v223 = vunpack.c.l.b16 %v191
    %v224 = vunpack.c.l.b16 %v192
    %v225 = vunpack.c.l.b16 %v193
    %v226 = vunpack.c.l.b16 %v194
    %v227 = vunpack.c.l.b16 %v195
    %v228 = vunpack.c.l.b16 %v196
    %v229 = vpack.c.b16 %v214, %v213
    %v230 = vpack.c.b16 %v216, %v215
    %v231 = vpack.c.b16 %v218, %v217
    %v232 = vpack.c.b16 %v220, %v219
    %v233 = vpack.c.b16 %v222, %v221
    %v234 = vpack.c.b16 %v224, %v223
    %v235 = vpack.c.b16 %v226, %v225
    %v236 = vpack.c.b16 %v228, %v227
    %245 = vmatpush.bf16.msra.mxu0 %v236
    %246 = vmatpush.bf16.msra.mxu0 %v235
    %247 = vmatpush.bf16.msra.mxu0 %v234
    %248 = vmatpush.bf16.msra.mxu0 %v233
    %249 = vmatpush.bf16.msra.mxu0 %v232
    %250 = vmatpush.bf16.msra.mxu0 %v231
    %251 = vmatpush.bf16.msra.mxu0 %v230
    %252 = vmatpush.bf16.msra.mxu0 %v229
    %253 = vmatmul.bf16.gmra.mxu0 %v180
    %v254 = vpop.f32.mrf.mxu0
    %v255 = vadd.f32 0.0, %v254
    %v256 = vpop.f32.mrf.mxu0
    %257 = vdwg.mxu0
    %v258 = vld [vmem:[%s6] sm:$0x1]
    %v260 = vperm.slane %v258, 0
    %v262 = vadd.f32 %v255, %v260
    %vm263 = vcmask 15360
    %264 = vst.msk [vmem:[%s7] sm:$0xff] %vm263, %v262
    // Predicated region
    $region38: #{tpu_custom_call.1} parent=1 // pred_check
      _
    $region39: #{tpu_custom_call.1} parent=1 // pred_check_branch
      %266 = sbr.rel (0) target = $region41
    $region40: #{tpu_custom_call.1} parent=1 // pred_region
      _
    $region41: #{tpu_custom_call.1} parent=1 // pred_fallthru
      _
    // Predicated region
    $region42: #{tpu_custom_call.1} parent=1 // pred_check
      _
    $region43: #{tpu_custom_call.1} parent=1 // pred_check_branch
      %268 = sbr.rel (0) target = $region45
    $region44: #{tpu_custom_call.1} parent=1 // pred_region
      _
    $region45: #{tpu_custom_call.1} parent=1 // pred_fallthru
      _
    %269 = vsyncpa [#allocation3], 1
    %270 = vsyncpa [#allocation5], 1

</llo_original>
